<compile_context>
chip_gen: v7x
topology: tpu7x:2x2x1
jax: 0.10.0
libtpu: 0.0.40
codegen_flags: <defaults>
</compile_context>

<pallas_src>
import jax
import jax.numpy as jnp
from jax import lax
from jax.experimental import pallas as pl
from jax.experimental.pallas import tpu as pltpu


# --------------------------------------------------------------------------
# One-time parameter preparation (hoisted out of the forward pass).
# --------------------------------------------------------------------------
def prepare_params(params, H, W, compute_dtype=jnp.float32):
    """Repack PyTorch-layout weights into row-matmul / Toeplitz form."""
    wt, bt = params["wt"], params["bt"]     # (Cin, Cmid, 2, 2), (Cmid,)
    w1, b1 = params["w1"], params["b1"]     # (Cout, Ctot, 3, 3), (Cout,)
    w2, b2 = params["w2"], params["b2"]     # (Cout, Cout, 3, 3), (Cout,)
    Cin, Cmid = wt.shape[0], wt.shape[1]
    Cout = w1.shape[0]
    W2 = 2 * W
    f32 = jnp.float32

    # --- ConvTranspose2d(k=2,s=2) as a single row-matmul ---------------------
    # up[2h+dy, (2w+dx)*Cmid+m] = sum_i x[h, w*Cin+i] * wt[i,m,dy,dx]
    # The dy tap is folded into K: rows of wt_stack are (dy, w, i).
    eyeW = jnp.eye(W, dtype=f32)
    T = jnp.einsum("uv,imyx->yuivxm", eyeW, wt.astype(f32))   # (2,W,Cin,W,2,Cmid)
    wt_stack = T.reshape(2 * W * Cin, W2 * Cmid)              # (128, 64)
    btv = jnp.tile(bt.astype(f32), W2).reshape(1, W2 * Cmid)  # (1, 64)

    # --- 3x3 'same' convs as banded (Toeplitz-in-W) row-matmuls --------------
    # D[c_in, c_out, dx] = 1 iff c_in == c_out + dx - 1  (W-padding baked in).
    c_in = jnp.arange(W2)[:, None, None]
    c_out = jnp.arange(W2)[None, :, None]
    dxs = jnp.arange(3)[None, None, :]
    D = (c_in == c_out + dxs - 1).astype(f32)                 # (W2, W2, 3)

    def conv_band(w):   # w: (Cout, Cin_conv, 3, 3)  OIHW
        return jnp.einsum("cwx,oiyx->yciwo", D, w.astype(f32)).reshape(
            3, W2 * w.shape[1], W2 * w.shape[0])

    # Activation K layout for conv1 is [enc block | up block] (same order as
    # torch.cat((enc, x), dim=1) once the weights are split accordingly).
    B1 = jnp.concatenate([conv_band(w1[:, :Cmid]),            # enc channels
                          conv_band(w1[:, Cmid:])], axis=1)   # up channels
    B2 = conv_band(w2)                                        # (3, 64, 64)
    b1v = jnp.tile(b1.astype(f32), W2).reshape(1, W2 * Cout)  # (1, 64)
    b2v = jnp.tile(b2.astype(f32), W2).reshape(1, W2 * Cout)  # (1, 64)

    cdt = compute_dtype
    return {"wt_stack": wt_stack.astype(cdt), "btv": btv,
            "B1": B1.astype(cdt), "b1v": b1v,
            "B2": B2.astype(cdt), "b2v": b2v}


# --------------------------------------------------------------------------
# Fused kernel: tconv + skip concat + conv3x3/ReLU + conv3x3/ReLU (per image).
# --------------------------------------------------------------------------
def _decoder_block_kernel(xd_ref, er_ref, wt_ref, btv_ref,
                          b1w_ref, b1b_ref, b2w_ref, b2b_ref, o_ref):
    H2 = er_ref.shape[1]
    cdt = wt_ref.dtype

    xd = xd_ref[0]                      # (H2, 2*W*Cin): rows pre-interleaved by dy
    er = er_ref[0]                      # (H2, W2*Cmid)

    # ConvTranspose2d(k=2, s=2): one MXU matmul, output rows are already the
    # upsampled image rows (pixel shuffle absorbed by the K layout).
    up = jnp.dot(xd, wt_ref[...], preferred_element_type=jnp.float32)
    up = (up + btv_ref[...]).astype(cdt)          # (H2, W2*Cmid)

    # Skip connection: channels-last lane concat [enc | up].
    v = jnp.concatenate([er, up], axis=-1)        # (H2, W2*Ctot) = (16, 128)

    def conv3x3_relu(a, w_ref, b_ref):
        # a: (H2, K) activation rows; w_ref: (3, K, W2*Cout) banded weights.
        z = jnp.zeros((1, a.shape[-1]), a.dtype)
        p = jnp.concatenate([z, a, z], axis=0)    # 'same' padding in H only
        acc = jnp.dot(p[0:H2], w_ref[0], preferred_element_type=jnp.float32)
        acc = acc + jnp.dot(p[1:H2 + 1], w_ref[1], preferred_element_type=jnp.float32)
        acc = acc + jnp.dot(p[2:H2 + 2], w_ref[2], preferred_element_type=jnp.float32)
        return jnp.maximum(acc + b_ref[...], 0.0)

    a1 = conv3x3_relu(v, b1w_ref, b1b_ref).astype(cdt)   # (H2, W2*Cout)
    a2 = conv3x3_relu(a1, b2w_ref, b2b_ref)              # (H2, W2*Cout)
    o_ref[0] = a2.astype(o_ref.dtype)


def _decoder_pallas(xd, er, wt_stack, btv, B1, b1v, B2, b2v):
    N, H2, _ = er.shape
    W2Cout = B2.shape[-1]
    return pl.pallas_call(
        _decoder_block_kernel,
        out_shape=jax.ShapeDtypeStruct((N, H2, W2Cout), jnp.float32),
        grid_spec=pltpu.PrefetchScalarGridSpec(
            num_scalar_prefetch=0,
            grid=(N,),
            in_specs=[
                pl.BlockSpec((1,) + xd.shape[1:], lambda n: (n, 0, 0)),
                pl.BlockSpec((1,) + er.shape[1:], lambda n: (n, 0, 0)),
                pl.BlockSpec(wt_stack.shape, lambda n: (0, 0)),
                pl.BlockSpec(btv.shape, lambda n: (0, 0)),
                pl.BlockSpec(B1.shape, lambda n: (0, 0, 0)),
                pl.BlockSpec(b1v.shape, lambda n: (0, 0)),
                pl.BlockSpec(B2.shape, lambda n: (0, 0, 0)),
                pl.BlockSpec(b2v.shape, lambda n: (0, 0)),
            ],
            out_specs=pl.BlockSpec((1, H2, W2Cout), lambda n: (n, 0, 0)),
        ),
        # Batch axis kept parallel so v7x's 2 TensorCores both get work.
        compiler_params=pltpu.CompilerParams(dimension_semantics=("parallel",)),
    )(xd, er, wt_stack, btv, B1, b1v, B2, b2v)


# --------------------------------------------------------------------------
# Forward wrapper: NCHW boundary transposes + row-interleave of x only.
# --------------------------------------------------------------------------
def decoder_block_forward(x_nchw, enc_nchw, prepared):
    cdt = prepared["wt_stack"].dtype
    N, Cin, H, W = x_nchw.shape
    _, Cmid, H2, W2 = enc_nchw.shape
    Cout = prepared["B2"].shape[-1] // W2

    # x: NCHW -> rows flattened on the lane axis, then interleave (dy) so the
    # tconv becomes a single row-matmul: row 2h+dy holds x row h in K-block dy.
    xr = jnp.transpose(x_nchw, (0, 2, 3, 1)).reshape(N, H, 1, W * Cin)
    z = jnp.zeros_like(xr)
    xd = jnp.concatenate([jnp.concatenate([xr, z], axis=-1),
                          jnp.concatenate([z, xr], axis=-1)],
                         axis=2).reshape(N, 2 * H, 2 * W * Cin).astype(cdt)

    er = jnp.transpose(enc_nchw, (0, 2, 3, 1)).reshape(N, H2, W2 * Cmid).astype(cdt)

    out = _decoder_pallas(xd, er, prepared["wt_stack"], prepared["btv"],
                          prepared["B1"], prepared["b1v"],
                          prepared["B2"], prepared["b2v"])
    return jnp.transpose(out.reshape(N, H2, W2, Cout), (0, 3, 1, 2))  # -> NCHW


# --------------------------------------------------------------------------
# Pure-JAX reference (NCHW) for correctness verification.
# --------------------------------------------------------------------------
def _reference_forward(x, enc, params):
    wt, bt = params["wt"], params["bt"]
    w1, b1 = params["w1"], params["b1"]
    w2, b2 = params["w2"], params["b2"]
    N, Cin, H, W = x.shape
    Cmid = wt.shape[1]

    t = jnp.einsum("nihw,ioyx->nohywx", x, wt)          # (N, Cmid, H, 2, W, 2)
    up = t.reshape(N, Cmid, 2 * H, 2 * W) + bt.reshape(1, Cmid, 1, 1)
    cat = jnp.concatenate([enc, up], axis=1)

    dn = ("NCHW", "OIHW", "NCHW")
    y = lax.conv_general_dilated(cat, w1, (1, 1), "SAME",
                                 dimension_numbers=dn) + b1.reshape(1, -1, 1, 1)
    y = jnp.maximum(y, 0.0)
    y = lax.conv_general_dilated(y, w2, (1, 1), "SAME",
                                 dimension_numbers=dn) + b2.reshape(1, -1, 1, 1)
    return jnp.maximum(y, 0.0)


if __name__ == "__main__":
    N, in_chans, out_chans = 2, 8, 4
    H = W = 8
    Cmid = in_chans // 2

    key = jax.random.PRNGKey(0)
    ks = jax.random.split(key, 8)
    x = jax.random.normal(ks[0], (N, in_chans, H, W), jnp.float32)
    enc_features = jax.random.normal(ks[1], (N, Cmid, 2 * H, 2 * W), jnp.float32)

    params = {
        "wt": 0.1 * jax.random.normal(ks[2], (in_chans, Cmid, 2, 2), jnp.float32),
        "bt": 0.1 * jax.random.normal(ks[3], (Cmid,), jnp.float32),
        "w1": 0.1 * jax.random.normal(ks[4], (out_chans, in_chans, 3, 3), jnp.float32),
        "b1": 0.1 * jax.random.normal(ks[5], (out_chans,), jnp.float32),
        "w2": 0.1 * jax.random.normal(ks[6], (out_chans, out_chans, 3, 3), jnp.float32),
        "b2": 0.1 * jax.random.normal(ks[7], (out_chans,), jnp.float32),
    }

    fwd = jax.jit(decoder_block_forward)
    ref = jax.block_until_ready(_reference_forward(x, enc_features, params))

    # f32 compute path (recommended default; best choice on v5e).
    prepared_f32 = prepare_params(params, H, W, jnp.float32)
    out = jax.block_until_ready(fwd(x, enc_features, prepared_f32))
    assert out.shape == (N, out_chans, 2 * H, 2 * W), out.shape
    assert jnp.allclose(out, ref, atol=1e-4, rtol=1e-4), \
        float(jnp.max(jnp.abs(out - ref)))

    # bf16 compute path (v6e/v7x MXU fast path, f32 accumulation) — loose check.
    prepared_bf16 = prepare_params(params, H, W, jnp.bfloat16)
    out_bf16 = jax.block_until_ready(fwd(x, enc_features, prepared_bf16))
    assert jnp.allclose(out_bf16, ref, atol=1e-1, rtol=1e-1), \
        float(jnp.max(jnp.abs(out_bf16 - ref)))

    print("KERNEL_OK")
</pallas_src>

<mosaic_0001>
module attributes {stable_mosaic.version = 11 : i64} {
  func.func @_decoder_block_kernel(%arg0: i32, %arg1: memref<1x16x128xf32, #tpu.memory_space<vmem>>, %arg2: memref<1x16x64xf32, #tpu.memory_space<vmem>>, %arg3: memref<128x64xf32, #tpu.memory_space<vmem>>, %arg4: memref<1x64xf32, #tpu.memory_space<vmem>>, %arg5: memref<3x128x64xf32, #tpu.memory_space<vmem>>, %arg6: memref<1x64xf32, #tpu.memory_space<vmem>>, %arg7: memref<3x64x64xf32, #tpu.memory_space<vmem>>, %arg8: memref<1x64xf32, #tpu.memory_space<vmem>>, %arg9: memref<1x16x64xf32, #tpu.memory_space<vmem>>) attributes {dimension_semantics = [#tpu.dimension_semantics<parallel>], iteration_bounds = array<i64: 2>, scalar_prefetch = 0 : i64, scratch_operands = 0 : i64, tpu.core_type = #tpu.core_type<tc>, window_params = [{transform_indices = @transform_0, window_bounds = array<i64: 1, 16, 128>}, {transform_indices = @transform_1, window_bounds = array<i64: 1, 16, 64>}, {pipeline_mode = #tpu.pipeline_mode<synchronous>, transform_indices = @transform_2, window_bounds = array<i64: 128, 64>}, {pipeline_mode = #tpu.pipeline_mode<synchronous>, transform_indices = @transform_3, window_bounds = array<i64: 1, 64>}, {pipeline_mode = #tpu.pipeline_mode<synchronous>, transform_indices = @transform_4, window_bounds = array<i64: 3, 128, 64>}, {pipeline_mode = #tpu.pipeline_mode<synchronous>, transform_indices = @transform_5, window_bounds = array<i64: 1, 64>}, {pipeline_mode = #tpu.pipeline_mode<synchronous>, transform_indices = @transform_6, window_bounds = array<i64: 3, 64, 64>}, {pipeline_mode = #tpu.pipeline_mode<synchronous>, transform_indices = @transform_7, window_bounds = array<i64: 1, 64>}, {transform_indices = @transform_8, window_bounds = array<i64: 1, 16, 64>}]} {
    %c0 = arith.constant 0 : index
    %c0_0 = arith.constant 0 : index
    %c0_1 = arith.constant 0 : index
    %0 = vector.load %arg1[%c0, %c0_0, %c0_1] : memref<1x16x128xf32, #tpu.memory_space<vmem>>, vector<1x16x128xf32>
    %1 = vector.shape_cast %0 : vector<1x16x128xf32> to vector<16x128xf32>
    %c0_2 = arith.constant 0 : index
    %c0_3 = arith.constant 0 : index
    %c0_4 = arith.constant 0 : index
    %2 = vector.load %arg2[%c0_2, %c0_3, %c0_4] : memref<1x16x64xf32, #tpu.memory_space<vmem>>, vector<1x16x64xf32>
    %3 = vector.shape_cast %2 : vector<1x16x64xf32> to vector<16x64xf32>
    %c0_5 = arith.constant 0 : index
    %c0_6 = arith.constant 0 : index
    %4 = vector.load %arg3[%c0_5, %c0_6] : memref<128x64xf32, #tpu.memory_space<vmem>>, vector<128x64xf32>
    %cst = arith.constant dense<0.000000e+00> : vector<16x64xf32>
    %5 = tpu.matmul %1, %4, %cst {dimension_numbers = #tpu.dot_dimension_numbers<[1], [0], [0], [1], [0, 0, 1, 1], [], []>} : vector<16x128xf32>, vector<128x64xf32>, vector<16x64xf32> -> vector<16x64xf32>
    %c0_7 = arith.constant 0 : index
    %c0_8 = arith.constant 0 : index
    %6 = vector.load %arg4[%c0_7, %c0_8] : memref<1x64xf32, #tpu.memory_space<vmem>>, vector<1x64xf32>
    %7 = vector.broadcast %6 : vector<1x64xf32> to vector<16x64xf32>
    %8 = arith.addf %5, %7 : vector<16x64xf32>
    %9 = tpu.concatenate %3, %8 in 1 : vector<16x64xf32>, vector<16x64xf32> -> vector<16x128xf32>
    %cst_9 = arith.constant 0.000000e+00 : f32
    %10 = vector.broadcast %cst_9 : f32 to vector<1x128xf32>
    %11 = tpu.concatenate %10, %9, %10 in 0 : vector<1x128xf32>, vector<16x128xf32>, vector<1x128xf32> -> vector<18x128xf32>
    %12 = vector.extract_strided_slice %11 {offsets = [0, 0], sizes = [16, 128], strides = [1, 1]} : vector<18x128xf32> to vector<16x128xf32>
    %c0_10 = arith.constant 0 : index
    %c0_11 = arith.constant 0 : index
    %c0_12 = arith.constant 0 : index
    %13 = vector.load %arg5[%c0_10, %c0_11, %c0_12] : memref<3x128x64xf32, #tpu.memory_space<vmem>>, vector<1x128x64xf32>
    %14 = vector.shape_cast %13 : vector<1x128x64xf32> to vector<128x64xf32>
    %cst_13 = arith.constant dense<0.000000e+00> : vector<16x64xf32>
    %15 = tpu.matmul %12, %14, %cst_13 {dimension_numbers = #tpu.dot_dimension_numbers<[1], [0], [0], [1], [0, 0, 1, 1], [], []>} : vector<16x128xf32>, vector<128x64xf32>, vector<16x64xf32> -> vector<16x64xf32>
    %16 = vector.extract_strided_slice %11 {offsets = [1, 0], sizes = [16, 128], strides = [1, 1]} : vector<18x128xf32> to vector<16x128xf32>
    %c1 = arith.constant 1 : index
    %c0_14 = arith.constant 0 : index
    %c0_15 = arith.constant 0 : index
    %17 = vector.load %arg5[%c1, %c0_14, %c0_15] : memref<3x128x64xf32, #tpu.memory_space<vmem>>, vector<1x128x64xf32>
    %18 = vector.shape_cast %17 : vector<1x128x64xf32> to vector<128x64xf32>
    %cst_16 = arith.constant dense<0.000000e+00> : vector<16x64xf32>
    %19 = tpu.matmul %16, %18, %cst_16 {dimension_numbers = #tpu.dot_dimension_numbers<[1], [0], [0], [1], [0, 0, 1, 1], [], []>} : vector<16x128xf32>, vector<128x64xf32>, vector<16x64xf32> -> vector<16x64xf32>
    %20 = arith.addf %15, %19 : vector<16x64xf32>
    %21 = vector.extract_strided_slice %11 {offsets = [2, 0], sizes = [16, 128], strides = [1, 1]} : vector<18x128xf32> to vector<16x128xf32>
    %c2 = arith.constant 2 : index
    %c0_17 = arith.constant 0 : index
    %c0_18 = arith.constant 0 : index
    %22 = vector.load %arg5[%c2, %c0_17, %c0_18] : memref<3x128x64xf32, #tpu.memory_space<vmem>>, vector<1x128x64xf32>
    %23 = vector.shape_cast %22 : vector<1x128x64xf32> to vector<128x64xf32>
    %cst_19 = arith.constant dense<0.000000e+00> : vector<16x64xf32>
    %24 = tpu.matmul %21, %23, %cst_19 {dimension_numbers = #tpu.dot_dimension_numbers<[1], [0], [0], [1], [0, 0, 1, 1], [], []>} : vector<16x128xf32>, vector<128x64xf32>, vector<16x64xf32> -> vector<16x64xf32>
    %25 = arith.addf %20, %24 : vector<16x64xf32>
    %c0_20 = arith.constant 0 : index
    %c0_21 = arith.constant 0 : index
    %26 = vector.load %arg6[%c0_20, %c0_21] : memref<1x64xf32, #tpu.memory_space<vmem>>, vector<1x64xf32>
    %27 = vector.broadcast %26 : vector<1x64xf32> to vector<16x64xf32>
    %28 = arith.addf %25, %27 : vector<16x64xf32>
    %cst_22 = arith.constant 0.000000e+00 : f32
    %29 = vector.broadcast %cst_22 : f32 to vector<16x64xf32>
    %30 = arith.maximumf %28, %29 : vector<16x64xf32>
    %cst_23 = arith.constant 0.000000e+00 : f32
    %31 = vector.broadcast %cst_23 : f32 to vector<1x64xf32>
    %32 = tpu.concatenate %31, %30, %31 in 0 : vector<1x64xf32>, vector<16x64xf32>, vector<1x64xf32> -> vector<18x64xf32>
    %33 = vector.extract_strided_slice %32 {offsets = [0, 0], sizes = [16, 64], strides = [1, 1]} : vector<18x64xf32> to vector<16x64xf32>
    %c0_24 = arith.constant 0 : index
    %c0_25 = arith.constant 0 : index
    %c0_26 = arith.constant 0 : index
    %34 = vector.load %arg7[%c0_24, %c0_25, %c0_26] : memref<3x64x64xf32, #tpu.memory_space<vmem>>, vector<1x64x64xf32>
    %35 = vector.shape_cast %34 : vector<1x64x64xf32> to vector<64x64xf32>
    %cst_27 = arith.constant dense<0.000000e+00> : vector<16x64xf32>
    %36 = tpu.matmul %33, %35, %cst_27 {dimension_numbers = #tpu.dot_dimension_numbers<[1], [0], [0], [1], [0, 0, 1, 1], [], []>} : vector<16x64xf32>, vector<64x64xf32>, vector<16x64xf32> -> vector<16x64xf32>
    %37 = vector.extract_strided_slice %32 {offsets = [1, 0], sizes = [16, 64], strides = [1, 1]} : vector<18x64xf32> to vector<16x64xf32>
    %c1_28 = arith.constant 1 : index
    %c0_29 = arith.constant 0 : index
    %c0_30 = arith.constant 0 : index
    %38 = vector.load %arg7[%c1_28, %c0_29, %c0_30] : memref<3x64x64xf32, #tpu.memory_space<vmem>>, vector<1x64x64xf32>
    %39 = vector.shape_cast %38 : vector<1x64x64xf32> to vector<64x64xf32>
    %cst_31 = arith.constant dense<0.000000e+00> : vector<16x64xf32>
    %40 = tpu.matmul %37, %39, %cst_31 {dimension_numbers = #tpu.dot_dimension_numbers<[1], [0], [0], [1], [0, 0, 1, 1], [], []>} : vector<16x64xf32>, vector<64x64xf32>, vector<16x64xf32> -> vector<16x64xf32>
    %41 = arith.addf %36, %40 : vector<16x64xf32>
    %42 = vector.extract_strided_slice %32 {offsets = [2, 0], sizes = [16, 64], strides = [1, 1]} : vector<18x64xf32> to vector<16x64xf32>
    %c2_32 = arith.constant 2 : index
    %c0_33 = arith.constant 0 : index
    %c0_34 = arith.constant 0 : index
    %43 = vector.load %arg7[%c2_32, %c0_33, %c0_34] : memref<3x64x64xf32, #tpu.memory_space<vmem>>, vector<1x64x64xf32>
    %44 = vector.shape_cast %43 : vector<1x64x64xf32> to vector<64x64xf32>
    %cst_35 = arith.constant dense<0.000000e+00> : vector<16x64xf32>
    %45 = tpu.matmul %42, %44, %cst_35 {dimension_numbers = #tpu.dot_dimension_numbers<[1], [0], [0], [1], [0, 0, 1, 1], [], []>} : vector<16x64xf32>, vector<64x64xf32>, vector<16x64xf32> -> vector<16x64xf32>
    %46 = arith.addf %41, %45 : vector<16x64xf32>
    %c0_36 = arith.constant 0 : index
    %c0_37 = arith.constant 0 : index
    %47 = vector.load %arg8[%c0_36, %c0_37] : memref<1x64xf32, #tpu.memory_space<vmem>>, vector<1x64xf32>
    %48 = vector.broadcast %47 : vector<1x64xf32> to vector<16x64xf32>
    %49 = arith.addf %46, %48 : vector<16x64xf32>
    %cst_38 = arith.constant 0.000000e+00 : f32
    %50 = vector.broadcast %cst_38 : f32 to vector<16x64xf32>
    %51 = arith.maximumf %49, %50 : vector<16x64xf32>
    %c0_39 = arith.constant 0 : index
    %c0_40 = arith.constant 0 : index
    %c0_41 = arith.constant 0 : index
    %52 = vector.load %arg9[%c0_39, %c0_40, %c0_41] : memref<1x16x64xf32, #tpu.memory_space<vmem>>, vector<1x16x64xf32>
    %53 = vector.shape_cast %52 : vector<1x16x64xf32> to vector<16x64xf32>
    %54 = vector.shape_cast %51 : vector<16x64xf32> to vector<1x16x64xf32>
    tpu.vector_store %arg9[%c0_39, %c0_40, %c0_41], %54 {strides = array<i32>} : memref<1x16x64xf32, #tpu.memory_space<vmem>>, vector<1x16x64xf32>,
    return
  }
  func.func @transform_0(%arg0: i32) -> (i32, i32, i32) {
    %c0_i32 = arith.constant 0 : i32
    %c0_i32_0 = arith.constant 0 : i32
    %c0_i32_1 = arith.constant 0 : i32
    return %arg0, %c0_i32, %c0_i32_0 : i32, i32, i32
  }
  func.func @transform_1(%arg0: i32) -> (i32, i32, i32) {
    %c0_i32 = arith.constant 0 : i32
    %c0_i32_0 = arith.constant 0 : i32
    %c0_i32_1 = arith.constant 0 : i32
    return %arg0, %c0_i32, %c0_i32_0 : i32, i32, i32
  }
  func.func @transform_2(%arg0: i32) -> (i32, i32) {
    %c0_i32 = arith.constant 0 : i32
    %c0_i32_0 = arith.constant 0 : i32
    %c0_i32_1 = arith.constant 0 : i32
    return %c0_i32, %c0_i32_0 : i32, i32
  }
  func.func @transform_3(%arg0: i32) -> (i32, i32) {
    %c0_i32 = arith.constant 0 : i32
    %c0_i32_0 = arith.constant 0 : i32
    %c0_i32_1 = arith.constant 0 : i32
    return %c0_i32, %c0_i32_0 : i32, i32
  }
  func.func @transform_4(%arg0: i32) -> (i32, i32, i32) {
    %c0_i32 = arith.constant 0 : i32
    %c0_i32_0 = arith.constant 0 : i32
    %c0_i32_1 = arith.constant 0 : i32
    %c0_i32_2 = arith.constant 0 : i32
    return %c0_i32, %c0_i32_0, %c0_i32_1 : i32, i32, i32
  }
  func.func @transform_5(%arg0: i32) -> (i32, i32) {
    %c0_i32 = arith.constant 0 : i32
    %c0_i32_0 = arith.constant 0 : i32
    %c0_i32_1 = arith.constant 0 : i32
    return %c0_i32, %c0_i32_0 : i32, i32
  }
  func.func @transform_6(%arg0: i32) -> (i32, i32, i32) {
    %c0_i32 = arith.constant 0 : i32
    %c0_i32_0 = arith.constant 0 : i32
    %c0_i32_1 = arith.constant 0 : i32
    %c0_i32_2 = arith.constant 0 : i32
    return %c0_i32, %c0_i32_0, %c0_i32_1 : i32, i32, i32
  }
  func.func @transform_7(%arg0: i32) -> (i32, i32) {
    %c0_i32 = arith.constant 0 : i32
    %c0_i32_0 = arith.constant 0 : i32
    %c0_i32_1 = arith.constant 0 : i32
    return %c0_i32, %c0_i32_0 : i32, i32
  }
  func.func @transform_8(%arg0: i32) -> (i32, i32, i32) {
    %c0_i32 = arith.constant 0 : i32
    %c0_i32_0 = arith.constant 0 : i32
    %c0_i32_1 = arith.constant 0 : i32
    return %arg0, %c0_i32, %c0_i32_0 : i32, i32, i32
  }
}

</mosaic_0001>

<llo_original>
// kernel: decoder_block_forward.1
$region0: #{decoder_block_forward.1}
  #allocation0 [shape = 'u32[]', space=smem, size = 0x4, offset = 0x4, fixed_abs, tag = 'smem constant byte address 0x4 - core index']
  #allocation1 [shape = 'u32[144,128]{1,0:T(1,128)}', space=vmem, size = 0x12000, scoped, tag = 'internal scratch']
  %s0 = inlined_call_operand.vmem [shape: f32[2,16,128], index: 0, kind: input, shape index: {}]
  %s1 = inlined_call_operand.vmem [shape: f32[2,16,64], index: 1, kind: input, shape index: {}]
  %s2 = inlined_call_operand.vmem [shape: f32[128,64], index: 2, kind: input, shape index: {}]
  %s3 = inlined_call_operand.vmem [shape: f32[1,64], index: 3, kind: input, shape index: {}]
  %s4 = inlined_call_operand.vmem [shape: f32[3,128,64], index: 4, kind: input, shape index: {}]
  %s5 = inlined_call_operand.vmem [shape: f32[1,64], index: 5, kind: input, shape index: {}]
  %s6 = inlined_call_operand.vmem [shape: f32[3,64,64], index: 6, kind: input, shape index: {}]
  %s7 = inlined_call_operand.vmem [shape: f32[1,64], index: 7, kind: input, shape index: {}]
  %s8 = inlined_call_operand.vmem [shape: f32[2,16,64], index: 8, kind: output, shape index: {}]
  %s9 = sld [smem:[#allocation0]]
  $region65: #{decoder_block_forward.1} parent=0
    _
  %s11 = ssub.s32 1, %s9
  %s12 = scalar_select 0, %s11, %s9
  loop: start=0, step=1, limit=4
  $region2: #{decoder_block_forward.1} parent=0 // loop_pre_header
    _
  $region3: #{decoder_block_forward.1} parent=0 // loop_header
    %s14 = sphi 0, %s18
    %p15 = scmp.ge.s32.totalorder %s14, 4
    %s24 = sphi 0, %s26
    %s27 = sphi 0, %s24
    %s28 = sphi 0, %s27
    %s44 = sphi 0, %s28
    %s50 = sphi 0, %s52
    %s53 = sphi 0, %s50
    %s54 = sphi 0, %s53
    %s70 = sphi 0, %s54
    %s74 = sphi 0, %s74
    %s76 = sphi 0, %s74
    %s77 = sphi 0, %s76
    %s91 = sphi 0, %s77
    %s95 = sphi 0, %s95
    %s97 = sphi 0, %s95
    %s98 = sphi 0, %s97
    %s112 = sphi 0, %s98
    %s116 = sphi 0, %s116
    %s118 = sphi 0, %s116
    %s119 = sphi 0, %s118
    %s133 = sphi 0, %s119
    %s137 = sphi 0, %s137
    %s139 = sphi 0, %s137
    %s140 = sphi 0, %s139
    %s154 = sphi 0, %s140
    %s158 = sphi 0, %s158
    %s160 = sphi 0, %s158
    %s161 = sphi 0, %s160
    %s175 = sphi 0, %s161
    %s179 = sphi 0, %s179
    %s181 = sphi 0, %s179
    %s182 = sphi 0, %s181
    %s196 = sphi 0, %s182
    %s202 = sphi 0, %s204
    %s205 = sphi 0, %s202
    %s206 = sphi 0, %s205
    %s222 = sphi 0, %s206
  $region4: #{decoder_block_forward.1} parent=0 // loop_header_branch
    %17 = sbr.rel (%p15) target = $region8
  $region5: #{decoder_block_forward.1} parent=0 // loop_body
    %s19 = ssub.s32 %s14, 1
    %s20 = ssub.s32 %s14, 2
    %s21 = sadd.s32 %s14, 1
    %s22 = ssub.s32 %s14, %s21
    %p23 = scmp.eq.s32.totalorder %s22, 0
    %s25 = sadd.s32 %s24, 1
    %s26 = scalar_select %p23, %s24, %s25
    %p29 = pneg %p23
    %p30 = scmp.eq.s32.totalorder %s14, 1
    %p31 = por %p29, %p30
    %p32 = scmp.ne.s32.totalorder %s24, %s27
    %p33 = scmp.eq.s32.totalorder %s14, 0
    %p34 = por %p32, %p33
    %p35 = scmp.ne.s32.totalorder %s24, %s27
    %p36 = scmp.eq.s32.totalorder %s19, 1
    %p37 = por %p35, %p36
    %p38 = scmp.ne.s32.totalorder %s27, %s28
    %p39 = scmp.eq.s32.totalorder %s19, 0
    %p40 = por %p38, %p39
    %p41 = scmp.ne.s32.totalorder %s27, %s28
    %p42 = scmp.eq.s32.totalorder %s20, 1
    %p43 = por %p41, %p42
    %p45 = scmp.ne.s32.totalorder %s28, %s44
    %p46 = scmp.eq.s32.totalorder %s20, 0
    %p47 = por %p45, %p46
    %s48 = ssub.s32 %s14, %s21
    %p49 = scmp.eq.s32.totalorder %s48, 0
    %s51 = sadd.s32 %s50, 1
    %s52 = scalar_select %p49, %s50, %s51
    %p55 = pneg %p49
    %p56 = scmp.eq.s32.totalorder %s14, 1
    %p57 = por %p55, %p56
    %p58 = scmp.ne.s32.totalorder %s50, %s53
    %p59 = scmp.eq.s32.totalorder %s14, 0
    %p60 = por %p58, %p59
    %p61 = scmp.ne.s32.totalorder %s50, %s53
    %p62 = scmp.eq.s32.totalorder %s19, 1
    %p63 = por %p61, %p62
    %p64 = scmp.ne.s32.totalorder %s53, %s54
    %p65 = scmp.eq.s32.totalorder %s19, 0
    %p66 = por %p64, %p65
    %p67 = scmp.ne.s32.totalorder %s53, %s54
    %p68 = scmp.eq.s32.totalorder %s20, 1
    %p69 = por %p67, %p68
    %p71 = scmp.ne.s32.totalorder %s54, %s70
    %p72 = scmp.eq.s32.totalorder %s20, 0
    %p73 = por %p71, %p72
    %s75 = sadd.s32 %s74, 1
    %p78 = scmp.eq.s32.totalorder %s14, 1
    %p79 = scmp.ne.s32.totalorder %s74, %s76
    %p80 = scmp.eq.s32.totalorder %s14, 0
    %p81 = por %p79, %p80
    %p82 = scmp.ne.s32.totalorder %s74, %s76
    %p83 = scmp.eq.s32.totalorder %s19, 1
    %p84 = por %p82, %p83
    %p85 = scmp.ne.s32.totalorder %s76, %s77
    %p86 = scmp.eq.s32.totalorder %s19, 0
    %p87 = por %p85, %p86
    %p88 = scmp.ne.s32.totalorder %s76, %s77
    %p89 = scmp.eq.s32.totalorder %s20, 1
    %p90 = por %p88, %p89
    %p92 = scmp.ne.s32.totalorder %s77, %s91
    %p93 = scmp.eq.s32.totalorder %s20, 0
    %p94 = por %p92, %p93
    %s96 = sadd.s32 %s95, 1
    %p99 = scmp.eq.s32.totalorder %s14, 1
    %p100 = scmp.ne.s32.totalorder %s95, %s97
    %p101 = scmp.eq.s32.totalorder %s14, 0
    %p102 = por %p100, %p101
    %p103 = scmp.ne.s32.totalorder %s95, %s97
    %p104 = scmp.eq.s32.totalorder %s19, 1
    %p105 = por %p103, %p104
    %p106 = scmp.ne.s32.totalorder %s97, %s98
    %p107 = scmp.eq.s32.totalorder %s19, 0
    %p108 = por %p106, %p107
    %p109 = scmp.ne.s32.totalorder %s97, %s98
    %p110 = scmp.eq.s32.totalorder %s20, 1
    %p111 = por %p109, %p110
    %p113 = scmp.ne.s32.totalorder %s98, %s112
    %p114 = scmp.eq.s32.totalorder %s20, 0
    %p115 = por %p113, %p114
    %s117 = sadd.s32 %s116, 1
    %p120 = scmp.eq.s32.totalorder %s14, 1
    %p121 = scmp.ne.s32.totalorder %s116, %s118
    %p122 = scmp.eq.s32.totalorder %s14, 0
    %p123 = por %p121, %p122
    %p124 = scmp.ne.s32.totalorder %s116, %s118
    %p125 = scmp.eq.s32.totalorder %s19, 1
    %p126 = por %p124, %p125
    %p127 = scmp.ne.s32.totalorder %s118, %s119
    %p128 = scmp.eq.s32.totalorder %s19, 0
    %p129 = por %p127, %p128
    %p130 = scmp.ne.s32.totalorder %s118, %s119
    %p131 = scmp.eq.s32.totalorder %s20, 1
    %p132 = por %p130, %p131
    %p134 = scmp.ne.s32.totalorder %s119, %s133
    %p135 = scmp.eq.s32.totalorder %s20, 0
    %p136 = por %p134, %p135
    %s138 = sadd.s32 %s137, 1
    %p141 = scmp.eq.s32.totalorder %s14, 1
    %p142 = scmp.ne.s32.totalorder %s137, %s139
    %p143 = scmp.eq.s32.totalorder %s14, 0
    %p144 = por %p142, %p143
    %p145 = scmp.ne.s32.totalorder %s137, %s139
    %p146 = scmp.eq.s32.totalorder %s19, 1
    %p147 = por %p145, %p146
    %p148 = scmp.ne.s32.totalorder %s139, %s140
    %p149 = scmp.eq.s32.totalorder %s19, 0
    %p150 = por %p148, %p149
    %p151 = scmp.ne.s32.totalorder %s139, %s140
    %p152 = scmp.eq.s32.totalorder %s20, 1
    %p153 = por %p151, %p152
    %p155 = scmp.ne.s32.totalorder %s140, %s154
    %p156 = scmp.eq.s32.totalorder %s20, 0
    %p157 = por %p155, %p156
    %s159 = sadd.s32 %s158, 1
    %p162 = scmp.eq.s32.totalorder %s14, 1
    %p163 = scmp.ne.s32.totalorder %s158, %s160
    %p164 = scmp.eq.s32.totalorder %s14, 0
    %p165 = por %p163, %p164
    %p166 = scmp.ne.s32.totalorder %s158, %s160
    %p167 = scmp.eq.s32.totalorder %s19, 1
    %p168 = por %p166, %p167
    %p169 = scmp.ne.s32.totalorder %s160, %s161
    %p170 = scmp.eq.s32.totalorder %s19, 0
    %p171 = por %p169, %p170
    %p172 = scmp.ne.s32.totalorder %s160, %s161
    %p173 = scmp.eq.s32.totalorder %s20, 1
    %p174 = por %p172, %p173
    %p176 = scmp.ne.s32.totalorder %s161, %s175
    %p177 = scmp.eq.s32.totalorder %s20, 0
    %p178 = por %p176, %p177
    %s180 = sadd.s32 %s179, 1
    %p183 = scmp.eq.s32.totalorder %s14, 1
    %p184 = scmp.ne.s32.totalorder %s179, %s181
    %p185 = scmp.eq.s32.totalorder %s14, 0
    %p186 = por %p184, %p185
    %p187 = scmp.ne.s32.totalorder %s179, %s181
    %p188 = scmp.eq.s32.totalorder %s19, 1
    %p189 = por %p187, %p188
    %p190 = scmp.ne.s32.totalorder %s181, %s182
    %p191 = scmp.eq.s32.totalorder %s19, 0
    %p192 = por %p190, %p191
    %p193 = scmp.ne.s32.totalorder %s181, %s182
    %p194 = scmp.eq.s32.totalorder %s20, 1
    %p195 = por %p193, %p194
    %p197 = scmp.ne.s32.totalorder %s182, %s196
    %p198 = scmp.eq.s32.totalorder %s20, 0
    %p199 = por %p197, %p198
    %s200 = ssub.s32 %s14, %s21
    %p201 = scmp.eq.s32.totalorder %s200, 0
    %s203 = sadd.s32 %s202, 1
    %s204 = scalar_select %p201, %s202, %s203
    %p207 = pneg %p201
    %p208 = scmp.eq.s32.totalorder %s14, 1
    %p209 = por %p207, %p208
    %p210 = scmp.ne.s32.totalorder %s202, %s205
    %p211 = scmp.eq.s32.totalorder %s14, 0
    %p212 = por %p210, %p211
    %p213 = scmp.ne.s32.totalorder %s202, %s205
    %p214 = scmp.eq.s32.totalorder %s19, 1
    %p215 = por %p213, %p214
    %p216 = scmp.ne.s32.totalorder %s205, %s206
    %p217 = scmp.eq.s32.totalorder %s19, 0
    %p218 = por %p216, %p217
    %p219 = scmp.ne.s32.totalorder %s205, %s206
    %p220 = scmp.eq.s32.totalorder %s20, 1
    %p221 = por %p219, %p220
    %p223 = scmp.ne.s32.totalorder %s206, %s222
    %p224 = scmp.eq.s32.totalorder %s20, 0
    %p225 = por %p223, %p224
    %p226 = scmp.le.s32.totalorder 1, %s14
    %p227 = scmp.lt.s32.totalorder %s14, 3
    %p228 = pnand %p226, %p227
    %p229 = pneg %p228
    // Predicated region
    $region9: #{decoder_block_forward.1} parent=5 // pred_check
      _
    $region10: #{decoder_block_forward.1} parent=5 // pred_check_branch
      %231 = sbr.rel (%p228) target = $region12
    $region11: #{decoder_block_forward.1} parent=5 // pred_region
      %s232 = ssub.s32 %s14, 1
      // Predicated region
      $region13: #{decoder_block_forward.1} parent=11 // pred_check
        %p233 = pneg %p87
      $region14: #{decoder_block_forward.1} parent=11 // pred_check_branch
        %235 = sbr.rel (%p233) target = $region16
      $region15: #{decoder_block_forward.1} parent=11 // pred_region
        _
      $region16: #{decoder_block_forward.1} parent=11 // pred_fallthru
        _
      // Predicated region
      $region17: #{decoder_block_forward.1} parent=11 // pred_check
        %p236 = pneg %p108
      $region18: #{decoder_block_forward.1} parent=11 // pred_check_branch
        %238 = sbr.rel (%p236) target = $region20
      $region19: #{decoder_block_forward.1} parent=11 // pred_region
        _
      $region20: #{decoder_block_forward.1} parent=11 // pred_fallthru
        _
      // Predicated region
      $region21: #{decoder_block_forward.1} parent=11 // pred_check
        %p239 = pneg %p129
      $region22: #{decoder_block_forward.1} parent=11 // pred_check_branch
        %241 = sbr.rel (%p239) target = $region24
      $region23: #{decoder_block_forward.1} parent=11 // pred_region
        _
      $region24: #{decoder_block_forward.1} parent=11 // pred_fallthru
        _
      // Predicated region
      $region25: #{decoder_block_forward.1} parent=11 // pred_check
        %p242 = pneg %p150
      $region26: #{decoder_block_forward.1} parent=11 // pred_check_branch
        %244 = sbr.rel (%p242) target = $region28
      $region27: #{decoder_block_forward.1} parent=11 // pred_region
        _
      $region28: #{decoder_block_forward.1} parent=11 // pred_fallthru
        _
      // Predicated region
      $region29: #{decoder_block_forward.1} parent=11 // pred_check
        %p245 = pneg %p171
      $region30: #{decoder_block_forward.1} parent=11 // pred_check_branch
        %247 = sbr.rel (%p245) target = $region32
      $region31: #{decoder_block_forward.1} parent=11 // pred_region
        _
      $region32: #{decoder_block_forward.1} parent=11 // pred_fallthru
        _
      // Predicated region
      $region33: #{decoder_block_forward.1} parent=11 // pred_check
        %p248 = pneg %p192
      $region34: #{decoder_block_forward.1} parent=11 // pred_check_branch
        %250 = sbr.rel (%p248) target = $region36
      $region35: #{decoder_block_forward.1} parent=11 // pred_region
        _
      $region36: #{decoder_block_forward.1} parent=11 // pred_fallthru
        _
    $region12: #{decoder_block_forward.1} parent=5 // pred_fallthru
      _
    %p251 = scmp.lt.s32.totalorder %s14, 2
    // Predicated region
    $region37: #{decoder_block_forward.1} parent=5 // pred_check
      %p252 = pneg %p251
    $region38: #{decoder_block_forward.1} parent=5 // pred_check_branch
      %254 = sbr.rel (%p252) target = $region40
    $region39: #{decoder_block_forward.1} parent=5 // pred_region
      // Predicated region
      $region41: #{decoder_block_forward.1} parent=39 // pred_check
        %p255 = pneg %p34
      $region42: #{decoder_block_forward.1} parent=39 // pred_check_branch
        %257 = sbr.rel (%p255) target = $region44
      $region43: #{decoder_block_forward.1} parent=39 // pred_region
        %p258 = scmp.lt.s32.totalorder %s14, 1
        %s259 = scalar_select %p258, %s14, 1
        %s260 = smul.addr %s259, 2
        %s261 = smul.addr %s260, 8
        %s262 = scalar_lea.vmem %s0, %s261
      $region44: #{decoder_block_forward.1} parent=39 // pred_fallthru
        _
      // Predicated region
      $region45: #{decoder_block_forward.1} parent=39 // pred_check
        %p263 = pneg %p60
      $region46: #{decoder_block_forward.1} parent=39 // pred_check_branch
        %265 = sbr.rel (%p263) target = $region48
      $region47: #{decoder_block_forward.1} parent=39 // pred_region
        %p266 = scmp.lt.s32.totalorder %s14, 1
        %s267 = scalar_select %p266, %s14, 1
        %s268 = smul.addr %s267, 2
        %s269 = smul.addr %s268, 8
        %s270 = scalar_lea.vmem %s1, %s269
      $region48: #{decoder_block_forward.1} parent=39 // pred_fallthru
        _
    $region40: #{decoder_block_forward.1} parent=5 // pred_fallthru
      _
    %p271 = scmp.le.s32.totalorder 1, %s14
    %p272 = scmp.lt.s32.totalorder %s14, 3
    %p273 = pnand %p271, %p272
    %p274 = pneg %p273
    // Predicated region
    $region49: #{decoder_block_forward.1} parent=5 // pred_check
      _
    $region50: #{decoder_block_forward.1} parent=5 // pred_check_branch
      %276 = sbr.rel (%p273) target = $region52
    $region51: #{decoder_block_forward.1} parent=5 // pred_region
      %s277 = ssub.s32 %s14, 1
      %p278 = scmp.lt.s32.totalorder %s19, 1
      %s279 = scalar_select %p278, %s19, 1
      %s280 = smul.addr %s279, 2
      %s281 = smul.addr %s280, 8
      %s282 = scalar_lea.vmem %s0, %s281
      %p283 = pneg %p40
      %p284 = pneg %p37
      %p285 = scmp.lt.s32.totalorder %s19, 1
      %s286 = scalar_select %p285, %s19, 1
      %s287 = smul.addr %s286, 2
      %s288 = smul.addr %s287, 8
      %s289 = scalar_lea.vmem %s1, %s288
      %p290 = pneg %p66
      %p291 = pneg %p63
      %p292 = pneg %p87
      %p293 = pneg %p84
      %p294 = pneg %p108
      %p295 = pneg %p105
      %p296 = pneg %p129
      %p297 = pneg %p126
      %p298 = pneg %p150
      %p299 = pneg %p147
      %p300 = pneg %p171
      %p301 = pneg %p168
      %p302 = pneg %p192
      %p303 = pneg %p189
      %p304 = pneg %p218
      %p305 = pneg %p215
      %p306 = scmp.lt.s32.totalorder %s19, 1
      %s307 = scalar_select %p306, %s19, 1
      %s308 = smul.addr %s307, 2
      %s309 = smul.addr %s308, 8
      %s310 = scalar_lea.vmem %s8, %s309
      %p311 = scmp.lt.s32.totalorder %s19, 1
      %s312 = scalar_select %p311, %s19, 1
      %s313 = smul.addr %s312, 2
      %s314 = smul.addr %s313, 8
      %s315 = scalar_lea.vmem %s0, %s314
      %p316 = scmp.lt.s32.totalorder %s19, 1
      %s317 = scalar_select %p316, %s19, 1
      %s318 = smul.addr %s317, 2
      %s319 = smul.addr %s318, 8
      %s320 = scalar_lea.vmem %s1, %s319
      %p321 = scmp.lt.s32.totalorder %s19, 1
      %s322 = scalar_select %p321, %s19, 1
      %s323 = smul.addr %s322, 2
      %s324 = smul.addr %s323, 8
      %s325 = scalar_lea.vmem %s8, %s324
      %v326 = vld [vmem:[%s315] sm:$0xff]
      %v327 = vld [vmem:[%s315 + $0x8] sm:$0xff]
      %v328 = vld [vmem:[%s320] sm:$0xff]
      %v329 = vld [vmem:[%s320 + $0x8] sm:$0xff]
      %v330 = vld [vmem:[%s2] sm:$0xff]
      %v331 = vld [vmem:[%s2 + $0x8] sm:$0xff]
      %v332 = vld [vmem:[%s2 + $0x10] sm:$0xff]
      %v333 = vld [vmem:[%s2 + $0x18] sm:$0xff]
      %v334 = vld [vmem:[%s2 + $0x20] sm:$0xff]
      %v335 = vld [vmem:[%s2 + $0x28] sm:$0xff]
      %v336 = vld [vmem:[%s2 + $0x30] sm:$0xff]
      %v337 = vld [vmem:[%s2 + $0x38] sm:$0xff]
      %v338 = vld [vmem:[%s2 + $0x40] sm:$0xff]
      %v339 = vld [vmem:[%s2 + $0x48] sm:$0xff]
      %v340 = vld [vmem:[%s2 + $0x50] sm:$0xff]
      %v341 = vld [vmem:[%s2 + $0x58] sm:$0xff]
      %v342 = vld [vmem:[%s2 + $0x60] sm:$0xff]
      %v343 = vld [vmem:[%s2 + $0x68] sm:$0xff]
      %v344 = vld [vmem:[%s2 + $0x70] sm:$0xff]
      %v345 = vld [vmem:[%s2 + $0x78] sm:$0xff]
      %v346 = vld [vmem:[%s3] sm:$0x1]
      %v348 = vlaneseq
      %v349 = vshrl.u32 %v348, 7
      %v350 = vsub.s32 0, %v349
      %v351 = vrot.slane %v346, %v350
      %353 = vmatprep.subr.mxu0 0.0
      %354 = vmatpush1.msra.mxu0 %v330
      %355 = vmatprep.subr.mxu0 0.0
      %356 = vmatpush1.msra.mxu0 %v331
      %357 = vmatprep.subr.mxu0 0.0
      %358 = vmatpush1.msra.mxu0 %v332
      %359 = vmatprep.subr.mxu0 0.0
      %360 = vmatpush1.msra.mxu0 %v333
      %361 = vmatprep.subr.mxu0 0.0
      %362 = vmatpush1.msra.mxu0 %v334
      %363 = vmatprep.subr.mxu0 0.0
      %364 = vmatpush1.msra.mxu0 %v335
      %365 = vmatprep.subr.mxu0 0.0
      %366 = vmatpush1.msra.mxu0 %v336
      %367 = vmatprep.subr.mxu0 0.0
      %368 = vmatpush1.msra.mxu0 %v337
      %369 = vmatprep.subr.mxu0 0.0
      %370 = vmatpush1.msra.mxu0 %v338
      %371 = vmatprep.subr.mxu0 0.0
      %372 = vmatpush1.msra.mxu0 %v339
      %373 = vmatprep.subr.mxu0 0.0
      %374 = vmatpush1.msra.mxu0 %v340
      %375 = vmatprep.subr.mxu0 0.0
      %376 = vmatpush1.msra.mxu0 %v341
      %377 = vmatprep.subr.mxu0 0.0
      %378 = vmatpush1.msra.mxu0 %v342
      %379 = vmatprep.subr.mxu0 0.0
      %380 = vmatpush1.msra.mxu0 %v343
      %381 = vmatprep.subr.mxu0 0.0
      %382 = vmatpush1.msra.mxu0 %v344
      %383 = vmatprep.subr.mxu0 0.0
      %384 = vmatpush1.msra.mxu0 %v345
      %385 = vmatprep.subr.mxu0 0.0
      %386 = vmatpush1.msra.mxu0 0.0
      %387 = vmatprep.subr.mxu0 0.0
      %388 = vmatpush1.msra.mxu0 0.0
      %389 = vmatprep.subr.mxu0 0.0
      %390 = vmatpush1.msra.mxu0 0.0
      %391 = vmatprep.subr.mxu0 0.0
      %392 = vmatpush1.msra.mxu0 0.0
      %393 = vmatprep.subr.mxu0 0.0
      %394 = vmatpush1.msra.mxu0 0.0
      %395 = vmatprep.subr.mxu0 0.0
      %396 = vmatpush1.msra.mxu0 0.0
      %397 = vmatprep.subr.mxu0 0.0
      %398 = vmatpush1.msra.mxu0 0.0
      %399 = vmatprep.subr.mxu0 0.0
      %400 = vmatpush1.msra.mxu0 0.0
      %401 = vmatprep.subr.mxu0 0.0
      %402 = vmatpush1.msra.mxu0 0.0
      %403 = vmatprep.subr.mxu0 0.0
      %404 = vmatpush1.msra.mxu0 0.0
      %405 = vmatprep.subr.mxu0 0.0
      %406 = vmatpush1.msra.mxu0 0.0
      %407 = vmatprep.subr.mxu0 0.0
      %408 = vmatpush1.msra.mxu0 0.0
      %409 = vmatprep.subr.mxu0 0.0
      %410 = vmatpush1.msra.mxu0 0.0
      %411 = vmatprep.subr.mxu0 0.0
      %412 = vmatpush1.msra.mxu0 0.0
      %413 = vmatprep.subr.mxu0 0.0
      %414 = vmatpush1.msra.mxu0 0.0
      %415 = vmatprep.subr.mxu0 0.0
      %416 = vmatpush1.msra.mxu0 0.0
      %417 = vmatprep.mubr.f32.mxu0 0.0
      %418 = vmatmul.mubr.f32.gmra.mrb[0].mxu0 %v326
      %v419 = vpop.f32.mrb[0].mxu0
      %v420 = vadd.f32 %v351, %v419
      %v421 = vpop.f32.mrb[0].mxu0
      %422 = vmatprep.mubr.f32.mxu0 0.0
      %423 = vmatmul.mubr.f32.gmra.mrb[0].mxu0 %v327
      %v424 = vpop.f32.mrb[0].mxu0
      %v425 = vadd.f32 %v351, %v424
      %v426 = vpop.f32.mrb[0].mxu0
      %427 = vdwg.mxu0
      %430 = vrot.lane.b32.xlu0 %v420, 64
      %v431 = vpop.permute.xlu0 %430
      %432 = vrot.lane.b32.xlu0 %v425, 64
      %v433 = vpop.permute.xlu0 %432
      %vm436 = vcmask 523264
      %v437 = vsel %vm436, %v328, %v431
      %v438 = vsel %vm436, %v329, %v433
      %vm441 = vcmask 1040384
      %v442 = vrot.slane %v437, 7
      %v443 = vrot.slane %v438, 7
      %v444 = vsel %vm441, %v442, %v443
      %v448 = vsel %vm441, 0.0, %v442
      %v449 = vsel %vm441, %v443, 0.0
      %v450 = vld [vmem:[%s4] sm:$0xff]
      %v451 = vld [vmem:[%s4 + $0x8] sm:$0xff]
      %v452 = vld [vmem:[%s4 + $0x10] sm:$0xff]
      %v453 = vld [vmem:[%s4 + $0x18] sm:$0xff]
      %v454 = vld [vmem:[%s4 + $0x20] sm:$0xff]
      %v455 = vld [vmem:[%s4 + $0x28] sm:$0xff]
      %v456 = vld [vmem:[%s4 + $0x30] sm:$0xff]
      %v457 = vld [vmem:[%s4 + $0x38] sm:$0xff]
      %v458 = vld [vmem:[%s4 + $0x40] sm:$0xff]
      %v459 = vld [vmem:[%s4 + $0x48] sm:$0xff]
      %v460 = vld [vmem:[%s4 + $0x50] sm:$0xff]
      %v461 = vld [vmem:[%s4 + $0x58] sm:$0xff]
      %v462 = vld [vmem:[%s4 + $0x60] sm:$0xff]
      %v463 = vld [vmem:[%s4 + $0x68] sm:$0xff]
      %v464 = vld [vmem:[%s4 + $0x70] sm:$0xff]
      %v465 = vld [vmem:[%s4 + $0x78] sm:$0xff]
      %s466 = scalar_lea.vmem %s4, 128
      %v467 = vld [vmem:[%s466] sm:$0xff]
      %v468 = vld [vmem:[%s466 + $0x8] sm:$0xff]
      %v469 = vld [vmem:[%s466 + $0x10] sm:$0xff]
      %v470 = vld [vmem:[%s466 + $0x18] sm:$0xff]
      %v471 = vld [vmem:[%s466 + $0x20] sm:$0xff]
      %v472 = vld [vmem:[%s466 + $0x28] sm:$0xff]
      %v473 = vld [vmem:[%s466 + $0x30] sm:$0xff]
      %v474 = vld [vmem:[%s466 + $0x38] sm:$0xff]
      %v475 = vld [vmem:[%s466 + $0x40] sm:$0xff]
      %v476 = vld [vmem:[%s466 + $0x48] sm:$0xff]
      %v477 = vld [vmem:[%s466 + $0x50] sm:$0xff]
      %v478 = vld [vmem:[%s466 + $0x58] sm:$0xff]
      %v479 = vld [vmem:[%s466 + $0x60] sm:$0xff]
      %v480 = vld [vmem:[%s466 + $0x68] sm:$0xff]
      %v481 = vld [vmem:[%s466 + $0x70] sm:$0xff]
      %v482 = vld [vmem:[%s466 + $0x78] sm:$0xff]
      %vm485 = vcmask 1046528
      %v486 = vrot.slane %v448, 1
      %v487 = vrot.slane %v444, 1
      %v488 = vsel %vm485, %v486, %v487
      %v489 = vrot.slane %v449, 1
      %v490 = vsel %vm485, %v487, %v489
      %493 = vmatprep.subr.mxu0 0.0
      %494 = vmatpush1.msra.mxu0 %v467
      %495 = vmatprep.subr.mxu0 0.0
      %496 = vmatpush1.msra.mxu0 %v468
      %497 = vmatprep.subr.mxu0 0.0
      %498 = vmatpush1.msra.mxu0 %v469
      %499 = vmatprep.subr.mxu0 0.0
      %500 = vmatpush1.msra.mxu0 %v470
      %501 = vmatprep.subr.mxu0 0.0
      %502 = vmatpush1.msra.mxu0 %v471
      %503 = vmatprep.subr.mxu0 0.0
      %504 = vmatpush1.msra.mxu0 %v472
      %505 = vmatprep.subr.mxu0 0.0
      %506 = vmatpush1.msra.mxu0 %v473
      %507 = vmatprep.subr.mxu0 0.0
      %508 = vmatpush1.msra.mxu0 %v474
      %509 = vmatprep.subr.mxu0 0.0
      %510 = vmatpush1.msra.mxu0 %v475
      %511 = vmatprep.subr.mxu0 0.0
      %512 = vmatpush1.msra.mxu0 %v476
      %513 = vmatprep.subr.mxu0 0.0
      %514 = vmatpush1.msra.mxu0 %v477
      %515 = vmatprep.subr.mxu0 0.0
      %516 = vmatpush1.msra.mxu0 %v478
      %517 = vmatprep.subr.mxu0 0.0
      %518 = vmatpush1.msra.mxu0 %v479
      %519 = vmatprep.subr.mxu0 0.0
      %520 = vmatpush1.msra.mxu0 %v480
      %521 = vmatprep.subr.mxu0 0.0
      %522 = vmatpush1.msra.mxu0 %v481
      %523 = vmatprep.subr.mxu0 0.0
      %524 = vmatpush1.msra.mxu0 %v482
      %525 = vmatprep.subr.mxu0 0.0
      %526 = vmatpush1.msra.mxu0 0.0
      %527 = vmatprep.subr.mxu0 0.0
      %528 = vmatpush1.msra.mxu0 0.0
      %529 = vmatprep.subr.mxu0 0.0
      %530 = vmatpush1.msra.mxu0 0.0
      %531 = vmatprep.subr.mxu0 0.0
      %532 = vmatpush1.msra.mxu0 0.0
      %533 = vmatprep.subr.mxu0 0.0
      %534 = vmatpush1.msra.mxu0 0.0
      %535 = vmatprep.subr.mxu0 0.0
      %536 = vmatpush1.msra.mxu0 0.0
      %537 = vmatprep.subr.mxu0 0.0
      %538 = vmatpush1.msra.mxu0 0.0
      %539 = vmatprep.subr.mxu0 0.0
      %540 = vmatpush1.msra.mxu0 0.0
      %541 = vmatprep.subr.mxu0 0.0
      %542 = vmatpush1.msra.mxu0 0.0
      %543 = vmatprep.subr.mxu0 0.0
      %544 = vmatpush1.msra.mxu0 0.0
      %545 = vmatprep.subr.mxu0 0.0
      %546 = vmatpush1.msra.mxu0 0.0
      %547 = vmatprep.subr.mxu0 0.0
      %548 = vmatpush1.msra.mxu0 0.0
      %549 = vmatprep.subr.mxu0 0.0
      %550 = vmatpush1.msra.mxu0 0.0
      %551 = vmatprep.subr.mxu0 0.0
      %552 = vmatpush1.msra.mxu0 0.0
      %553 = vmatprep.subr.mxu0 0.0
      %554 = vmatpush1.msra.mxu0 0.0
      %555 = vmatprep.subr.mxu0 0.0
      %556 = vmatpush1.msra.mxu0 0.0
      %557 = vmatprep.mubr.f32.mxu0 0.0
      %558 = vmatmul.mubr.f32.gmra.mrb[0].mxu0 %v488
      %v559 = vpop.f32.mrb[0].mxu0
      %v560 = vadd.f32 0.0, %v559
      %v561 = vpop.f32.mrb[0].mxu0
      %562 = vmatprep.mubr.f32.mxu0 0.0
      %563 = vmatmul.mubr.f32.gmra.mrb[0].mxu0 %v490
      %v564 = vpop.f32.mrb[0].mxu0
      %v565 = vadd.f32 0.0, %v564
      %v566 = vpop.f32.mrb[0].mxu0
      %567 = vdwg.mxu0
      %568 = vmatprep.subr.mxu0 0.0
      %569 = vmatpush1.msra.mxu0 %v450
      %570 = vmatprep.subr.mxu0 0.0
      %571 = vmatpush1.msra.mxu0 %v451
      %572 = vmatprep.subr.mxu0 0.0
      %573 = vmatpush1.msra.mxu0 %v452
      %574 = vmatprep.subr.mxu0 0.0
      %575 = vmatpush1.msra.mxu0 %v453
      %576 = vmatprep.subr.mxu0 0.0
      %577 = vmatpush1.msra.mxu0 %v454
      %578 = vmatprep.subr.mxu0 0.0
      %579 = vmatpush1.msra.mxu0 %v455
      %580 = vmatprep.subr.mxu0 0.0
      %581 = vmatpush1.msra.mxu0 %v456
      %582 = vmatprep.subr.mxu0 0.0
      %583 = vmatpush1.msra.mxu0 %v457
      %584 = vmatprep.subr.mxu0 0.0
      %585 = vmatpush1.msra.mxu0 %v458
      %586 = vmatprep.subr.mxu0 0.0
      %587 = vmatpush1.msra.mxu0 %v459
      %588 = vmatprep.subr.mxu0 0.0
      %589 = vmatpush1.msra.mxu0 %v460
      %590 = vmatprep.subr.mxu0 0.0
      %591 = vmatpush1.msra.mxu0 %v461
      %592 = vmatprep.subr.mxu0 0.0
      %593 = vmatpush1.msra.mxu0 %v462
      %594 = vmatprep.subr.mxu0 0.0
      %595 = vmatpush1.msra.mxu0 %v463
      %596 = vmatprep.subr.mxu0 0.0
      %597 = vmatpush1.msra.mxu0 %v464
      %598 = vmatprep.subr.mxu0 0.0
      %599 = vmatpush1.msra.mxu0 %v465
      %600 = vmatprep.subr.mxu0 0.0
      %601 = vmatpush1.msra.mxu0 0.0
      %602 = vmatprep.subr.mxu0 0.0
      %603 = vmatpush1.msra.mxu0 0.0
      %604 = vmatprep.subr.mxu0 0.0
      %605 = vmatpush1.msra.mxu0 0.0
      %606 = vmatprep.subr.mxu0 0.0
      %607 = vmatpush1.msra.mxu0 0.0
      %608 = vmatprep.subr.mxu0 0.0
      %609 = vmatpush1.msra.mxu0 0.0
      %610 = vmatprep.subr.mxu0 0.0
      %611 = vmatpush1.msra.mxu0 0.0
      %612 = vmatprep.subr.mxu0 0.0
      %613 = vmatpush1.msra.mxu0 0.0
      %614 = vmatprep.subr.mxu0 0.0
      %615 = vmatpush1.msra.mxu0 0.0
      %616 = vmatprep.subr.mxu0 0.0
      %617 = vmatpush1.msra.mxu0 0.0
      %618 = vmatprep.subr.mxu0 0.0
      %619 = vmatpush1.msra.mxu0 0.0
      %620 = vmatprep.subr.mxu0 0.0
      %621 = vmatpush1.msra.mxu0 0.0
      %622 = vmatprep.subr.mxu0 0.0
      %623 = vmatpush1.msra.mxu0 0.0
      %624 = vmatprep.subr.mxu0 0.0
      %625 = vmatpush1.msra.mxu0 0.0
      %626 = vmatprep.subr.mxu0 0.0
      %627 = vmatpush1.msra.mxu0 0.0
      %628 = vmatprep.subr.mxu0 0.0
      %629 = vmatpush1.msra.mxu0 0.0
      %630 = vmatprep.subr.mxu0 0.0
      %631 = vmatpush1.msra.mxu0 0.0
      %632 = vmatprep.mubr.f32.mxu0 0.0
      %633 = vmatmul.mubr.f32.gmra.mrb[0].mxu0 %v448
      %v634 = vpop.f32.mrb[0].mxu0
      %v635 = vadd.f32 %v560, %v634
      %v636 = vpop.f32.mrb[0].mxu0
      %637 = vmatprep.mubr.f32.mxu0 0.0
      %638 = vmatmul.mubr.f32.gmra.mrb[0].mxu0 %v444
      %v639 = vpop.f32.mrb[0].mxu0
      %v640 = vadd.f32 %v565, %v639
      %v641 = vpop.f32.mrb[0].mxu0
      %642 = vdwg.mxu0
      %s643 = scalar_lea.vmem %s4, 256
      %v644 = vld [vmem:[%s643] sm:$0xff]
      %v645 = vld [vmem:[%s643 + $0x8] sm:$0xff]
      %v646 = vld [vmem:[%s643 + $0x10] sm:$0xff]
      %v647 = vld [vmem:[%s643 + $0x18] sm:$0xff]
      %v648 = vld [vmem:[%s643 + $0x20] sm:$0xff]
      %v649 = vld [vmem:[%s643 + $0x28] sm:$0xff]
      %v650 = vld [vmem:[%s643 + $0x30] sm:$0xff]
      %v651 = vld [vmem:[%s643 + $0x38] sm:$0xff]
      %v652 = vld [vmem:[%s643 + $0x40] sm:$0xff]
      %v653 = vld [vmem:[%s643 + $0x48] sm:$0xff]
      %v654 = vld [vmem:[%s643 + $0x50] sm:$0xff]
      %v655 = vld [vmem:[%s643 + $0x58] sm:$0xff]
      %v656 = vld [vmem:[%s643 + $0x60] sm:$0xff]
      %v657 = vld [vmem:[%s643 + $0x68] sm:$0xff]
      %v658 = vld [vmem:[%s643 + $0x70] sm:$0xff]
      %v659 = vld [vmem:[%s643 + $0x78] sm:$0xff]
      %vm660 = vcmask 1045504
      %v661 = vrot.slane %v448, 2
      %v662 = vrot.slane %v444, 2
      %v663 = vsel %vm660, %v661, %v662
      %v664 = vrot.slane %v449, 2
      %v665 = vsel %vm660, %v662, %v664
      %668 = vmatprep.subr.mxu0 0.0
      %669 = vmatpush1.msra.mxu0 %v644
      %670 = vmatprep.subr.mxu0 0.0
      %671 = vmatpush1.msra.mxu0 %v645
      %672 = vmatprep.subr.mxu0 0.0
      %673 = vmatpush1.msra.mxu0 %v646
      %674 = vmatprep.subr.mxu0 0.0
      %675 = vmatpush1.msra.mxu0 %v647
      %676 = vmatprep.subr.mxu0 0.0
      %677 = vmatpush1.msra.mxu0 %v648
      %678 = vmatprep.subr.mxu0 0.0
      %679 = vmatpush1.msra.mxu0 %v649
      %680 = vmatprep.subr.mxu0 0.0
      %681 = vmatpush1.msra.mxu0 %v650
      %682 = vmatprep.subr.mxu0 0.0
      %683 = vmatpush1.msra.mxu0 %v651
      %684 = vmatprep.subr.mxu0 0.0
      %685 = vmatpush1.msra.mxu0 %v652
      %686 = vmatprep.subr.mxu0 0.0
      %687 = vmatpush1.msra.mxu0 %v653
      %688 = vmatprep.subr.mxu0 0.0
      %689 = vmatpush1.msra.mxu0 %v654
      %690 = vmatprep.subr.mxu0 0.0
      %691 = vmatpush1.msra.mxu0 %v655
      %692 = vmatprep.subr.mxu0 0.0
      %693 = vmatpush1.msra.mxu0 %v656
      %694 = vmatprep.subr.mxu0 0.0
      %695 = vmatpush1.msra.mxu0 %v657
      %696 = vmatprep.subr.mxu0 0.0
      %697 = vmatpush1.msra.mxu0 %v658
      %698 = vmatprep.subr.mxu0 0.0
      %699 = vmatpush1.msra.mxu0 %v659
      %700 = vmatprep.subr.mxu0 0.0
      %701 = vmatpush1.msra.mxu0 0.0
      %702 = vmatprep.subr.mxu0 0.0
      %703 = vmatpush1.msra.mxu0 0.0
      %704 = vmatprep.subr.mxu0 0.0
      %705 = vmatpush1.msra.mxu0 0.0
      %706 = vmatprep.subr.mxu0 0.0
      %707 = vmatpush1.msra.mxu0 0.0
      %708 = vmatprep.subr.mxu0 0.0
      %709 = vmatpush1.msra.mxu0 0.0
      %710 = vmatprep.subr.mxu0 0.0
      %711 = vmatpush1.msra.mxu0 0.0
      %712 = vmatprep.subr.mxu0 0.0
      %713 = vmatpush1.msra.mxu0 0.0
      %714 = vmatprep.subr.mxu0 0.0
      %715 = vmatpush1.msra.mxu0 0.0
      %716 = vmatprep.subr.mxu0 0.0
      %717 = vmatpush1.msra.mxu0 0.0
      %718 = vmatprep.subr.mxu0 0.0
      %719 = vmatpush1.msra.mxu0 0.0
      %720 = vmatprep.subr.mxu0 0.0
      %721 = vmatpush1.msra.mxu0 0.0
      %722 = vmatprep.subr.mxu0 0.0
      %723 = vmatpush1.msra.mxu0 0.0
      %724 = vmatprep.subr.mxu0 0.0
      %725 = vmatpush1.msra.mxu0 0.0
      %726 = vmatprep.subr.mxu0 0.0
      %727 = vmatpush1.msra.mxu0 0.0
      %728 = vmatprep.subr.mxu0 0.0
      %729 = vmatpush1.msra.mxu0 0.0
      %730 = vmatprep.subr.mxu0 0.0
      %731 = vmatpush1.msra.mxu0 0.0
      %732 = vmatprep.mubr.f32.mxu0 0.0
      %733 = vmatmul.mubr.f32.gmra.mrb[0].mxu0 %v663
      %v734 = vpop.f32.mrb[0].mxu0
      %v735 = vadd.f32 0.0, %v734
      %v736 = vpop.f32.mrb[0].mxu0
      %737 = vmatprep.mubr.f32.mxu0 0.0
      %738 = vmatmul.mubr.f32.gmra.mrb[0].mxu0 %v665
      %v739 = vpop.f32.mrb[0].mxu0
      %v740 = vadd.f32 0.0, %v739
      %v741 = vpop.f32.mrb[0].mxu0
      %742 = vdwg.mxu0
      %v743 = vadd.f32 %v635, %v735
      %v744 = vadd.f32 %v640, %v740
      %v745 = vld [vmem:[%s5] sm:$0x1]
      %v747 = vlaneseq
      %v748 = vshrl.u32 %v747, 7
      %v749 = vsub.s32 0, %v748
      %v750 = vrot.slane %v745, %v749
      %v752 = vadd.f32 %v743, %v750
      %v753 = vadd.f32 %v744, %v750
      %v754 = vmax.f32 %v752, 0.0
      %v755 = vmax.f32 %v753, 0.0
      %v758 = vrot.slane %v754, 7
      %v759 = vrot.slane %v755, 7
      %v760 = vsel %vm441, %v758, %v759
      %v763 = vsel %vm441, 0.0, %v758
      %v764 = vsel %vm441, %v759, 0.0
      %v765 = vld [vmem:[%s6] sm:$0xff]
      %v766 = vld [vmem:[%s6 + $0x8] sm:$0xff]
      %v767 = vld [vmem:[%s6 + $0x10] sm:$0xff]
      %v768 = vld [vmem:[%s6 + $0x18] sm:$0xff]
      %v769 = vld [vmem:[%s6 + $0x20] sm:$0xff]
      %v770 = vld [vmem:[%s6 + $0x28] sm:$0xff]
      %v771 = vld [vmem:[%s6 + $0x30] sm:$0xff]
      %v772 = vld [vmem:[%s6 + $0x38] sm:$0xff]
      %s773 = scalar_lea.vmem %s6, 64
      %v774 = vld [vmem:[%s773] sm:$0xff]
      %v775 = vld [vmem:[%s773 + $0x8] sm:$0xff]
      %v776 = vld [vmem:[%s773 + $0x10] sm:$0xff]
      %v777 = vld [vmem:[%s773 + $0x18] sm:$0xff]
      %v778 = vld [vmem:[%s773 + $0x20] sm:$0xff]
      %v779 = vld [vmem:[%s773 + $0x28] sm:$0xff]
      %v780 = vld [vmem:[%s773 + $0x30] sm:$0xff]
      %v781 = vld [vmem:[%s773 + $0x38] sm:$0xff]
      %v784 = vrot.slane %v763, 1
      %v785 = vrot.slane %v760, 1
      %v786 = vsel %vm485, %v784, %v785
      %v787 = vrot.slane %v764, 1
      %v788 = vsel %vm485, %v785, %v787
      %v789 = vsel %vm436, %v786, 0
      %v791 = vsel %vm436, %v788, 0
      %793 = vmatprep.subr.mxu0 0.0
      %794 = vmatpush1.msra.mxu0 %v774
      %795 = vmatprep.subr.mxu0 0.0
      %796 = vmatpush1.msra.mxu0 %v775
      %797 = vmatprep.subr.mxu0 0.0
      %798 = vmatpush1.msra.mxu0 %v776
      %799 = vmatprep.subr.mxu0 0.0
      %800 = vmatpush1.msra.mxu0 %v777
      %801 = vmatprep.subr.mxu0 0.0
      %802 = vmatpush1.msra.mxu0 %v778
      %803 = vmatprep.subr.mxu0 0.0
      %804 = vmatpush1.msra.mxu0 %v779
      %805 = vmatprep.subr.mxu0 0.0
      %806 = vmatpush1.msra.mxu0 %v780
      %807 = vmatprep.subr.mxu0 0.0
      %808 = vmatpush1.msra.mxu0 %v781
      %809 = vmatprep.subr.mxu0 0.0
      %810 = vmatpush1.msra.mxu0 0.0
      %811 = vmatprep.subr.mxu0 0.0
      %812 = vmatpush1.msra.mxu0 0.0
      %813 = vmatprep.subr.mxu0 0.0
      %814 = vmatpush1.msra.mxu0 0.0
      %815 = vmatprep.subr.mxu0 0.0
      %816 = vmatpush1.msra.mxu0 0.0
      %817 = vmatprep.subr.mxu0 0.0
      %818 = vmatpush1.msra.mxu0 0.0
      %819 = vmatprep.subr.mxu0 0.0
      %820 = vmatpush1.msra.mxu0 0.0
      %821 = vmatprep.subr.mxu0 0.0
      %822 = vmatpush1.msra.mxu0 0.0
      %823 = vmatprep.subr.mxu0 0.0
      %824 = vmatpush1.msra.mxu0 0.0
      %825 = vmatprep.subr.mxu0 0.0
      %826 = vmatpush1.msra.mxu0 0.0
      %827 = vmatprep.subr.mxu0 0.0
      %828 = vmatpush1.msra.mxu0 0.0
      %829 = vmatprep.subr.mxu0 0.0
      %830 = vmatpush1.msra.mxu0 0.0
      %831 = vmatprep.subr.mxu0 0.0
      %832 = vmatpush1.msra.mxu0 0.0
      %833 = vmatprep.subr.mxu0 0.0
      %834 = vmatpush1.msra.mxu0 0.0
      %835 = vmatprep.subr.mxu0 0.0
      %836 = vmatpush1.msra.mxu0 0.0
      %837 = vmatprep.subr.mxu0 0.0
      %838 = vmatpush1.msra.mxu0 0.0
      %839 = vmatprep.subr.mxu0 0.0
      %840 = vmatpush1.msra.mxu0 0.0
      %841 = vmatprep.subr.mxu0 0.0
      %842 = vmatpush1.msra.mxu0 0.0
      %843 = vmatprep.subr.mxu0 0.0
      %844 = vmatpush1.msra.mxu0 0.0
      %845 = vmatprep.subr.mxu0 0.0
      %846 = vmatpush1.msra.mxu0 0.0
      %847 = vmatprep.subr.mxu0 0.0
      %848 = vmatpush1.msra.mxu0 0.0
      %849 = vmatprep.subr.mxu0 0.0
      %850 = vmatpush1.msra.mxu0 0.0
      %851 = vmatprep.subr.mxu0 0.0
      %852 = vmatpush1.msra.mxu0 0.0
      %853 = vmatprep.subr.mxu0 0.0
      %854 = vmatpush1.msra.mxu0 0.0
      %855 = vmatprep.subr.mxu0 0.0
      %856 = vmatpush1.msra.mxu0 0.0
      %857 = vmatprep.mubr.f32.mxu0 0.0
      %858 = vmatmul.mubr.f32.gmra.mrb[0].mxu0 %v789
      %v859 = vpop.f32.mrb[0].mxu0
      %v860 = vadd.f32 0.0, %v859
      %v861 = vpop.f32.mrb[0].mxu0
      %862 = vmatprep.mubr.f32.mxu0 0.0
      %863 = vmatmul.mubr.f32.gmra.mrb[0].mxu0 %v791
      %v864 = vpop.f32.mrb[0].mxu0
      %v865 = vadd.f32 0.0, %v864
      %v866 = vpop.f32.mrb[0].mxu0
      %867 = vdwg.mxu0
      %v868 = vsel %vm436, %v763, 0
      %v870 = vsel %vm436, %v760, 0
      %872 = vmatprep.subr.mxu0 0.0
      %873 = vmatpush1.msra.mxu0 %v765
      %874 = vmatprep.subr.mxu0 0.0
      %875 = vmatpush1.msra.mxu0 %v766
      %876 = vmatprep.subr.mxu0 0.0
      %877 = vmatpush1.msra.mxu0 %v767
      %878 = vmatprep.subr.mxu0 0.0
      %879 = vmatpush1.msra.mxu0 %v768
      %880 = vmatprep.subr.mxu0 0.0
      %881 = vmatpush1.msra.mxu0 %v769
      %882 = vmatprep.subr.mxu0 0.0
      %883 = vmatpush1.msra.mxu0 %v770
      %884 = vmatprep.subr.mxu0 0.0
      %885 = vmatpush1.msra.mxu0 %v771
      %886 = vmatprep.subr.mxu0 0.0
      %887 = vmatpush1.msra.mxu0 %v772
      %888 = vmatprep.subr.mxu0 0.0
      %889 = vmatpush1.msra.mxu0 0.0
      %890 = vmatprep.subr.mxu0 0.0
      %891 = vmatpush1.msra.mxu0 0.0
      %892 = vmatprep.subr.mxu0 0.0
      %893 = vmatpush1.msra.mxu0 0.0
      %894 = vmatprep.subr.mxu0 0.0
      %895 = vmatpush1.msra.mxu0 0.0
      %896 = vmatprep.subr.mxu0 0.0
      %897 = vmatpush1.msra.mxu0 0.0
      %898 = vmatprep.subr.mxu0 0.0
      %899 = vmatpush1.msra.mxu0 0.0
      %900 = vmatprep.subr.mxu0 0.0
      %901 = vmatpush1.msra.mxu0 0.0
      %902 = vmatprep.subr.mxu0 0.0
      %903 = vmatpush1.msra.mxu0 0.0
      %904 = vmatprep.subr.mxu0 0.0
      %905 = vmatpush1.msra.mxu0 0.0
      %906 = vmatprep.subr.mxu0 0.0
      %907 = vmatpush1.msra.mxu0 0.0
      %908 = vmatprep.subr.mxu0 0.0
      %909 = vmatpush1.msra.mxu0 0.0
      %910 = vmatprep.subr.mxu0 0.0
      %911 = vmatpush1.msra.mxu0 0.0
      %912 = vmatprep.subr.mxu0 0.0
      %913 = vmatpush1.msra.mxu0 0.0
      %914 = vmatprep.subr.mxu0 0.0
      %915 = vmatpush1.msra.mxu0 0.0
      %916 = vmatprep.subr.mxu0 0.0
      %917 = vmatpush1.msra.mxu0 0.0
      %918 = vmatprep.subr.mxu0 0.0
      %919 = vmatpush1.msra.mxu0 0.0
      %920 = vmatprep.subr.mxu0 0.0
      %921 = vmatpush1.msra.mxu0 0.0
      %922 = vmatprep.subr.mxu0 0.0
      %923 = vmatpush1.msra.mxu0 0.0
      %924 = vmatprep.subr.mxu0 0.0
      %925 = vmatpush1.msra.mxu0 0.0
      %926 = vmatprep.subr.mxu0 0.0
      %927 = vmatpush1.msra.mxu0 0.0
      %928 = vmatprep.subr.mxu0 0.0
      %929 = vmatpush1.msra.mxu0 0.0
      %930 = vmatprep.subr.mxu0 0.0
      %931 = vmatpush1.msra.mxu0 0.0
      %932 = vmatprep.subr.mxu0 0.0
      %933 = vmatpush1.msra.mxu0 0.0
      %934 = vmatprep.subr.mxu0 0.0
      %935 = vmatpush1.msra.mxu0 0.0
      %936 = vmatprep.mubr.f32.mxu0 0.0
      %937 = vmatmul.mubr.f32.gmra.mrb[0].mxu0 %v868
      %v938 = vpop.f32.mrb[0].mxu0
      %v939 = vadd.f32 %v860, %v938
      %v940 = vpop.f32.mrb[0].mxu0
      %941 = vmatprep.mubr.f32.mxu0 0.0
      %942 = vmatmul.mubr.f32.gmra.mrb[0].mxu0 %v870
      %v943 = vpop.f32.mrb[0].mxu0
      %v944 = vadd.f32 %v865, %v943
      %v945 = vpop.f32.mrb[0].mxu0
      %946 = vdwg.mxu0
      %s947 = scalar_lea.vmem %s6, 128
      %v948 = vld [vmem:[%s947] sm:$0xff]
      %v949 = vld [vmem:[%s947 + $0x8] sm:$0xff]
      %v950 = vld [vmem:[%s947 + $0x10] sm:$0xff]
      %v951 = vld [vmem:[%s947 + $0x18] sm:$0xff]
      %v952 = vld [vmem:[%s947 + $0x20] sm:$0xff]
      %v953 = vld [vmem:[%s947 + $0x28] sm:$0xff]
      %v954 = vld [vmem:[%s947 + $0x30] sm:$0xff]
      %v955 = vld [vmem:[%s947 + $0x38] sm:$0xff]
      %v956 = vrot.slane %v763, 2
      %v957 = vrot.slane %v760, 2
      %v958 = vsel %vm660, %v956, %v957
      %v959 = vrot.slane %v764, 2
      %v960 = vsel %vm660, %v957, %v959
      %v961 = vsel %vm436, %v958, 0
      %v963 = vsel %vm436, %v960, 0
      %965 = vmatprep.subr.mxu0 0.0
      %966 = vmatpush1.msra.mxu0 %v948
      %967 = vmatprep.subr.mxu0 0.0
      %968 = vmatpush1.msra.mxu0 %v949
      %969 = vmatprep.subr.mxu0 0.0
      %970 = vmatpush1.msra.mxu0 %v950
      %971 = vmatprep.subr.mxu0 0.0
      %972 = vmatpush1.msra.mxu0 %v951
      %973 = vmatprep.subr.mxu0 0.0
      %974 = vmatpush1.msra.mxu0 %v952
      %975 = vmatprep.subr.mxu0 0.0
      %976 = vmatpush1.msra.mxu0 %v953
      %977 = vmatprep.subr.mxu0 0.0
      %978 = vmatpush1.msra.mxu0 %v954
      %979 = vmatprep.subr.mxu0 0.0
      %980 = vmatpush1.msra.mxu0 %v955
      %981 = vmatprep.subr.mxu0 0.0
      %982 = vmatpush1.msra.mxu0 0.0
      %983 = vmatprep.subr.mxu0 0.0
      %984 = vmatpush1.msra.mxu0 0.0
      %985 = vmatprep.subr.mxu0 0.0
      %986 = vmatpush1.msra.mxu0 0.0
      %987 = vmatprep.subr.mxu0 0.0
      %988 = vmatpush1.msra.mxu0 0.0
      %989 = vmatprep.subr.mxu0 0.0
      %990 = vmatpush1.msra.mxu0 0.0
      %991 = vmatprep.subr.mxu0 0.0
      %992 = vmatpush1.msra.mxu0 0.0
      %993 = vmatprep.subr.mxu0 0.0
      %994 = vmatpush1.msra.mxu0 0.0
      %995 = vmatprep.subr.mxu0 0.0
      %996 = vmatpush1.msra.mxu0 0.0
      %997 = vmatprep.subr.mxu0 0.0
      %998 = vmatpush1.msra.mxu0 0.0
      %999 = vmatprep.subr.mxu0 0.0
      %1000 = vmatpush1.msra.mxu0 0.0
      %1001 = vmatprep.subr.mxu0 0.0
      %1002 = vmatpush1.msra.mxu0 0.0
      %1003 = vmatprep.subr.mxu0 0.0
      %1004 = vmatpush1.msra.mxu0 0.0
      %1005 = vmatprep.subr.mxu0 0.0
      %1006 = vmatpush1.msra.mxu0 0.0
      %1007 = vmatprep.subr.mxu0 0.0
      %1008 = vmatpush1.msra.mxu0 0.0
      %1009 = vmatprep.subr.mxu0 0.0
      %1010 = vmatpush1.msra.mxu0 0.0
      %1011 = vmatprep.subr.mxu0 0.0
      %1012 = vmatpush1.msra.mxu0 0.0
      %1013 = vmatprep.subr.mxu0 0.0
      %1014 = vmatpush1.msra.mxu0 0.0
      %1015 = vmatprep.subr.mxu0 0.0
      %1016 = vmatpush1.msra.mxu0 0.0
      %1017 = vmatprep.subr.mxu0 0.0
      %1018 = vmatpush1.msra.mxu0 0.0
      %1019 = vmatprep.subr.mxu0 0.0
      %1020 = vmatpush1.msra.mxu0 0.0
      %1021 = vmatprep.subr.mxu0 0.0
      %1022 = vmatpush1.msra.mxu0 0.0
      %1023 = vmatprep.subr.mxu0 0.0
      %1024 = vmatpush1.msra.mxu0 0.0
      %1025 = vmatprep.subr.mxu0 0.0
      %1026 = vmatpush1.msra.mxu0 0.0
      %1027 = vmatprep.subr.mxu0 0.0
      %1028 = vmatpush1.msra.mxu0 0.0
      %1029 = vmatprep.mubr.f32.mxu0 0.0
      %1030 = vmatmul.mubr.f32.gmra.mrb[0].mxu0 %v961
      %v1031 = vpop.f32.mrb[0].mxu0
      %v1032 = vadd.f32 0.0, %v1031
      %v1033 = vpop.f32.mrb[0].mxu0
      %1034 = vmatprep.mubr.f32.mxu0 0.0
      %1035 = vmatmul.mubr.f32.gmra.mrb[0].mxu0 %v963
      %v1036 = vpop.f32.mrb[0].mxu0
      %v1037 = vadd.f32 0.0, %v1036
      %v1038 = vpop.f32.mrb[0].mxu0
      %1039 = vdwg.mxu0
      %v1040 = vadd.f32 %v939, %v1032
      %v1041 = vadd.f32 %v944, %v1037
      %v1042 = vld [vmem:[%s7] sm:$0x1]
      %v1044 = vlaneseq
      %v1045 = vshrl.u32 %v1044, 7
      %v1046 = vsub.s32 0, %v1045
      %v1047 = vrot.slane %v1042, %v1046
      %v1049 = vadd.f32 %v1040, %v1047
      %v1050 = vadd.f32 %v1041, %v1047
      %v1051 = vmax.f32 %v1049, 0.0
      %v1052 = vmax.f32 %v1050, 0.0
      %1053 = vst.msk [vmem:[%s325] sm:$0xff] %vm436, %v1051
      %1054 = vst.msk [vmem:[%s325 + $0x8] sm:$0xff] %vm436, %v1052
      %p1055 = scmp.lt.s32.totalorder %s19, 1
      %s1056 = scalar_select %p1055, %s19, 1
      %s1057 = smul.addr %s1056, 2
      %s1058 = smul.addr %s1057, 8
      %s1059 = scalar_lea.vmem %s8, %s1058
      // Predicated region
      $region53: #{decoder_block_forward.1} parent=51 // pred_check
        %p1060 = pneg %p215
      $region54: #{decoder_block_forward.1} parent=51 // pred_check_branch
        %1062 = sbr.rel (%p1060) target = $region56
      $region55: #{decoder_block_forward.1} parent=51 // pred_region
        _
      $region56: #{decoder_block_forward.1} parent=51 // pred_fallthru
        _
    $region52: #{decoder_block_forward.1} parent=5 // pred_fallthru
      _
    %p1063 = scmp.le.s32.totalorder 2, %s14
    // Predicated region
    $region57: #{decoder_block_forward.1} parent=5 // pred_check
      %p1064 = pneg %p1063
    $region58: #{decoder_block_forward.1} parent=5 // pred_check_branch
      %1066 = sbr.rel (%p1064) target = $region60
    $region59: #{decoder_block_forward.1} parent=5 // pred_region
      %s1067 = ssub.s32 %s14, 2
      // Predicated region
      $region61: #{decoder_block_forward.1} parent=59 // pred_check
        %p1068 = pneg %p221
      $region62: #{decoder_block_forward.1} parent=59 // pred_check_branch
        %1070 = sbr.rel (%p1068) target = $region64
      $region63: #{decoder_block_forward.1} parent=59 // pred_region
        %p1071 = scmp.lt.s32.totalorder %s20, 1
        %s1072 = scalar_select %p1071, %s20, 1
        %s1073 = smul.addr %s1072, 2
        %s1074 = smul.addr %s1073, 8
        %s1075 = scalar_lea.vmem %s8, %s1074
      $region64: #{decoder_block_forward.1} parent=59 // pred_fallthru
        _
    $region60: #{decoder_block_forward.1} parent=5 // pred_fallthru
      _
  $region6: #{decoder_block_forward.1} parent=0 // loop_footer
    %s18 = sadd.s32 1, %s14
  $region7: #{decoder_block_forward.1} parent=0 // loop_footer_branch
    %13 = sbr.rel target = $region3
  $region8: #{decoder_block_forward.1} parent=0 // loop_exit
    _

</llo_original>
